<compile_context>
chip_gen: v7x
topology: tpu7x:2x2x1
jax: 0.10.0
libtpu: 0.0.40
codegen_flags: <defaults>
</compile_context>

<pallas_src>
import jax
import jax.numpy as jnp
from jax.experimental import pallas as pl
from jax.experimental.pallas import tpu as pltpu


def vq_kernel(zt_ref, e_ref, et_ref, esq_ref, zq_ref, idx_ref):
    """Quantize a (D, TN) tile of flattened latents (lane axis = TN).

    zt_ref  : (D,  TN) latent vectors, transposed (lane-dense along N)
    e_ref   : (K,  D)  codebook (LHS of the distance matmul)
    et_ref  : (D,  K)  codebook transposed (LHS of the gather matmul)
    esq_ref : (K,  1)  precomputed ||e_k||^2
    zq_ref  : (D,  TN) quantized latents (nearest codebook entry), transposed
    idx_ref : (1,  TN) argmin indices, lane-dense (int32)
    """
    z_t = zt_ref[...].astype(jnp.float32)       # (D, TN)
    e = e_ref[...].astype(jnp.float32)          # (K, D)
    e_t = et_ref[...].astype(jnp.float32)       # (D, K)
    e_sq = esq_ref[...]                         # (K, 1)

    k = e.shape[0]

    # Argmin-equivalent distance: ||z||^2 only shifts every column by a
    # constant, so d' = ||e||^2 - 2 e.z has the same per-column argmin.
    dots = jnp.dot(e, z_t, preferred_element_type=jnp.float32)    # (K, TN)
    d = e_sq - 2.0 * dots                                         # (K, TN)

    # Manual argmin over the sublane (K) axis using only min-reductions:
    # lowest index among the minima == torch.argmin tie-break (first match).
    min_d = jnp.min(d, axis=0, keepdims=True)                     # (1, TN)
    k_iota = jax.lax.broadcasted_iota(jnp.int32, d.shape, 0)      # (K, TN)
    k_iota_f = k_iota.astype(jnp.float32)
    idx_f = jnp.min(jnp.where(d == min_d, k_iota_f, jnp.float32(k)),
                    axis=0, keepdims=True)                        # (1, TN)
    idx = idx_f.astype(jnp.int32)                                 # (1, TN)

    # One-hot (VMEM only) drives the codebook gather on the MXU.
    enc = (k_iota == idx).astype(jnp.float32)                     # (K, TN)
    zq_t = jnp.dot(e_t, enc, preferred_element_type=jnp.float32)  # (D, TN)

    zq_ref[...] = zq_t.astype(zq_ref.dtype)
    idx_ref[...] = idx                                            # lane-dense store


def vector_quantizer_forward(z, embedding, beta, *, tile_n=None):
    """Forward pass matching pl_dalle VectorQuantizer.forward semantics.

    z         : (B, C, H, W) float32, NCHW (PyTorch layout)
    embedding : (num_tokens, codebook_dim) float32 codebook
    Returns (z_q_nchw, loss, (perplexity, encodings, encoding_indices)).
    """
    B, C, H, W = z.shape
    K, D = embedding.shape
    assert C == D, "channel dim must equal codebook_dim"

    N = B * H * W
    # NCHW -> (D, N): channel on the sublane axis, flattened (b, h, w) on the
    # lane axis.  Column ordering n = b*H*W + h*W + w matches the PyTorch
    # NHWC-flatten, so encoding_indices line up 1:1 with the module.
    z_t = jnp.transpose(z.reshape(B, C, H * W), (1, 0, 2)).reshape(D, N)
    z_t = z_t.astype(jnp.float32)

    # Whole problem fits in VMEM with huge margin at these sizes -> one grid step.
    if tile_n is None:
        tile_n = N
    assert N % tile_n == 0, "N must be divisible by tile_n"
    num_tiles = N // tile_n

    e_f32 = embedding.astype(jnp.float32)
    e_t = e_f32.T                                          # (D, K)
    e_sq = jnp.sum(e_f32 * e_f32, axis=1)[:, None]         # (K, 1)

    out_shapes = (
        jax.ShapeDtypeStruct((D, N), jnp.float32),             # z_q, transposed
        jax.ShapeDtypeStruct((num_tiles, tile_n), jnp.int32),  # indices, lane-dense
    )

    zq_t, idx2d = pl.pallas_call(
        vq_kernel,
        out_shape=out_shapes,
        grid=(num_tiles,),
        in_specs=[
            pl.BlockSpec((D, tile_n), lambda i: (0, i)),   # z tiles over lanes
            pl.BlockSpec((K, D), lambda i: (0, 0)),        # codebook    (resident)
            pl.BlockSpec((D, K), lambda i: (0, 0)),        # codebook^T  (resident)
            pl.BlockSpec((K, 1), lambda i: (0, 0)),        # ||e||^2     (resident)
        ],
        out_specs=(
            pl.BlockSpec((D, tile_n), lambda i: (0, i)),
            pl.BlockSpec((1, tile_n), lambda i: (i, 0)),
        ),
        compiler_params=pltpu.CompilerParams(
            dimension_semantics=("parallel",)),            # no cross-step state
    )(z_t, e_f32, e_t, e_sq)

    encoding_indices = idx2d.reshape(-1)                   # (N,)

    # Reconstruct the (N, K) one-hot in the wrapper (API parity with the module)
    # instead of writing 256 KB of one-hot back from the kernel.
    encodings = jax.nn.one_hot(encoding_indices, K, dtype=z.dtype)
    avg_probs = jnp.mean(encodings, axis=0)                # (K,)
    perplexity = jnp.exp(-jnp.sum(avg_probs * jnp.log(avg_probs + 1e-10)))

    # Forward value: beta * mse(zq.detach(), z) + mse(zq, z.detach()) == (beta+1) * mse.
    mse = jnp.mean((zq_t - z_t) ** 2)
    loss = (beta + 1.0) * mse

    # TODO(synk): training parity needs a jax.custom_vjp implementing the
    # straight-through estimator z + stop_grad(z_q - z) and the beta-weighted
    # codebook/commitment gradients; forward values already match.
    z_q_nchw = jnp.transpose(zq_t.reshape(D, B, H * W), (1, 0, 2)).reshape(B, D, H, W)
    z_q_nchw = z_q_nchw.astype(z.dtype)

    return z_q_nchw, loss, (perplexity, encodings, encoding_indices)


def _reference_forward(z, embedding, beta):
    """Pure-JAX reference mirroring the PyTorch module (for a sanity check)."""
    B, C, H, W = z.shape
    K, D = embedding.shape
    z_nhwc = jnp.transpose(z, (0, 2, 3, 1))
    z_flat = z_nhwc.reshape(-1, D)
    d = (jnp.sum(z_flat ** 2, axis=1, keepdims=True)
         + jnp.sum(embedding ** 2, axis=1)
         - 2.0 * z_flat @ embedding.T)
    idx = jnp.argmin(d, axis=1)
    z_q = embedding[idx].reshape(z_nhwc.shape)
    enc = jax.nn.one_hot(idx, K, dtype=z.dtype)
    avg_probs = jnp.mean(enc, axis=0)
    perplexity = jnp.exp(-jnp.sum(avg_probs * jnp.log(avg_probs + 1e-10)))
    loss = (beta + 1.0) * jnp.mean((z_q - z_nhwc) ** 2)
    return jnp.transpose(z_q, (0, 3, 1, 2)), loss, perplexity, idx


if __name__ == "__main__":
    import numpy as np

    num_tokens = 128
    codebook_dim = 4
    beta = 0.25

    key = jax.random.PRNGKey(0)
    k_emb, k_z = jax.random.split(key)
    # nn.Embedding(num_tokens, codebook_dim).weight.data.normal_()
    embedding = jax.random.normal(k_emb, (num_tokens, codebook_dim), dtype=jnp.float32)
    # Input latent map, NCHW like a conv feature map.
    z = jax.random.normal(k_z, (2, codebook_dim, 16, 16), dtype=jnp.float32)

    z_q, loss, (perplexity, encodings, encoding_indices) = jax.block_until_ready(
        vector_quantizer_forward(z, embedding, beta))

    # Sanity check against a pure-JAX reference.
    zq_ref, loss_ref, ppl_ref, idx_ref = _reference_forward(z, embedding, beta)
    assert np.allclose(np.asarray(z_q), np.asarray(zq_ref), atol=1e-5)
    assert np.allclose(float(loss), float(loss_ref), atol=1e-5)
    assert np.allclose(float(perplexity), float(ppl_ref), atol=1e-3)
    assert np.array_equal(np.asarray(encoding_indices), np.asarray(idx_ref))

    print("KERNEL_OK")
</pallas_src>

<mosaic_0001>
module attributes {stable_mosaic.version = 11 : i64} {
  func.func @vq_kernel(%arg0: i32, %arg1: memref<4x512xf32, #tpu.memory_space<vmem>>, %arg2: memref<128x4xf32, #tpu.memory_space<vmem>>, %arg3: memref<4x128xf32, #tpu.memory_space<vmem>>, %arg4: memref<128x1xf32, #tpu.memory_space<vmem>>, %arg5: memref<4x512xf32, #tpu.memory_space<vmem>>, %arg6: memref<1x512xi32, #tpu.memory_space<vmem>>) attributes {dimension_semantics = [#tpu.dimension_semantics<parallel>], iteration_bounds = array<i64: 1>, scalar_prefetch = 0 : i64, scratch_operands = 0 : i64, tpu.core_type = #tpu.core_type<tc>, window_params = [{transform_indices = @transform_0, window_bounds = array<i64: 4, 512>}, {pipeline_mode = #tpu.pipeline_mode<synchronous>, transform_indices = @transform_1, window_bounds = array<i64: 128, 4>}, {pipeline_mode = #tpu.pipeline_mode<synchronous>, transform_indices = @transform_2, window_bounds = array<i64: 4, 128>}, {pipeline_mode = #tpu.pipeline_mode<synchronous>, transform_indices = @transform_3, window_bounds = array<i64: 128, 1>}, {transform_indices = @transform_4, window_bounds = array<i64: 4, 512>}, {transform_indices = @transform_5, window_bounds = array<i64: 1, 512>}]} {
    %c0 = arith.constant 0 : index
    %c0_0 = arith.constant 0 : index
    %0 = vector.load %arg1[%c0, %c0_0] : memref<4x512xf32, #tpu.memory_space<vmem>>, vector<4x512xf32>
    %c0_1 = arith.constant 0 : index
    %c0_2 = arith.constant 0 : index
    %1 = vector.load %arg2[%c0_1, %c0_2] : memref<128x4xf32, #tpu.memory_space<vmem>>, vector<128x4xf32>
    %c0_3 = arith.constant 0 : index
    %c0_4 = arith.constant 0 : index
    %2 = vector.load %arg3[%c0_3, %c0_4] : memref<4x128xf32, #tpu.memory_space<vmem>>, vector<4x128xf32>
    %c0_5 = arith.constant 0 : index
    %c0_6 = arith.constant 0 : index
    %3 = vector.load %arg4[%c0_5, %c0_6] : memref<128x1xf32, #tpu.memory_space<vmem>>, vector<128x1xf32>
    %cst = arith.constant dense<0.000000e+00> : vector<128x512xf32>
    %4 = tpu.matmul %1, %0, %cst {dimension_numbers = #tpu.dot_dimension_numbers<[1], [0], [0], [1], [0, 0, 1, 1], [], []>} : vector<128x4xf32>, vector<4x512xf32>, vector<128x512xf32> -> vector<128x512xf32>
    %cst_7 = arith.constant 2.000000e+00 : f32
    %5 = vector.broadcast %cst_7 : f32 to vector<128x512xf32>
    %6 = arith.mulf %5, %4 : vector<128x512xf32>
    %7 = vector.broadcast %3 : vector<128x1xf32> to vector<128x512xf32>
    %8 = arith.subf %7, %6 : vector<128x512xf32>
    %cst_8 = arith.constant dense<0x7F800000> : vector<512xf32>
    %9 = vector.multi_reduction <minimumf>, %8, %cst_8 [0] : vector<128x512xf32> to vector<512xf32>
    %10 = vector.shape_cast %9 : vector<512xf32> to vector<1x512xf32>
    %11 = tpu.iota {dimensions = array<i32: 0>} : vector<128x512xi32>
    %12 = arith.sitofp %11 : vector<128x512xi32> to vector<128x512xf32>
    %13 = vector.broadcast %10 : vector<1x512xf32> to vector<128x512xf32>
    %14 = arith.cmpf oeq, %8, %13 : vector<128x512xf32>
    %cst_9 = arith.constant 1.280000e+02 : f32
    %15 = vector.broadcast %cst_9 : f32 to vector<128x512xf32>
    %16 = arith.select %14, %12, %15 : vector<128x512xi1>, vector<128x512xf32>
    %cst_10 = arith.constant dense<0x7F800000> : vector<512xf32>
    %17 = vector.multi_reduction <minimumf>, %16, %cst_10 [0] : vector<128x512xf32> to vector<512xf32>
    %18 = vector.shape_cast %17 : vector<512xf32> to vector<1x512xf32>
    %19 = arith.fptosi %18 : vector<1x512xf32> to vector<1x512xi32>
    %20 = vector.broadcast %19 : vector<1x512xi32> to vector<128x512xi32>
    %21 = arith.cmpi eq, %11, %20 : vector<128x512xi32>
    %22 = arith.extui %21 : vector<128x512xi1> to vector<128x512xi32>
    %23 = arith.sitofp %22 : vector<128x512xi32> to vector<128x512xf32>
    %cst_11 = arith.constant dense<0.000000e+00> : vector<4x512xf32>
    %24 = tpu.matmul %2, %23, %cst_11 {dimension_numbers = #tpu.dot_dimension_numbers<[1], [0], [0], [1], [0, 0, 1, 1], [], []>} : vector<4x128xf32>, vector<128x512xf32>, vector<4x512xf32> -> vector<4x512xf32>
    %c0_12 = arith.constant 0 : index
    %c0_13 = arith.constant 0 : index
    %25 = vector.load %arg5[%c0_12, %c0_13] : memref<4x512xf32, #tpu.memory_space<vmem>>, vector<4x512xf32>
    tpu.vector_store %arg5[%c0_12, %c0_13], %24 {strides = array<i32>} : memref<4x512xf32, #tpu.memory_space<vmem>>, vector<4x512xf32>,
    %c0_14 = arith.constant 0 : index
    %c0_15 = arith.constant 0 : index
    %26 = vector.load %arg6[%c0_14, %c0_15] : memref<1x512xi32, #tpu.memory_space<vmem>>, vector<1x512xi32>
    tpu.vector_store %arg6[%c0_14, %c0_15], %19 {strides = array<i32>} : memref<1x512xi32, #tpu.memory_space<vmem>>, vector<1x512xi32>,
    return
  }
  func.func @transform_0(%arg0: i32) -> (i32, i32) {
    %c0_i32 = arith.constant 0 : i32
    %c0_i32_0 = arith.constant 0 : i32
    return %c0_i32, %arg0 : i32, i32
  }
  func.func @transform_1(%arg0: i32) -> (i32, i32) {
    %c0_i32 = arith.constant 0 : i32
    %c0_i32_0 = arith.constant 0 : i32
    %c0_i32_1 = arith.constant 0 : i32
    return %c0_i32, %c0_i32_0 : i32, i32
  }
  func.func @transform_2(%arg0: i32) -> (i32, i32) {
    %c0_i32 = arith.constant 0 : i32
    %c0_i32_0 = arith.constant 0 : i32
    %c0_i32_1 = arith.constant 0 : i32
    return %c0_i32, %c0_i32_0 : i32, i32
  }
  func.func @transform_3(%arg0: i32) -> (i32, i32) {
    %c0_i32 = arith.constant 0 : i32
    %c0_i32_0 = arith.constant 0 : i32
    %c0_i32_1 = arith.constant 0 : i32
    return %c0_i32, %c0_i32_0 : i32, i32
  }
  func.func @transform_4(%arg0: i32) -> (i32, i32) {
    %c0_i32 = arith.constant 0 : i32
    %c0_i32_0 = arith.constant 0 : i32
    return %c0_i32, %arg0 : i32, i32
  }
  func.func @transform_5(%arg0: i32) -> (i32, i32) {
    %c0_i32 = arith.constant 0 : i32
    %c0_i32_0 = arith.constant 0 : i32
    return %arg0, %c0_i32 : i32, i32
  }
}

</mosaic_0001>

<llo_original>
// kernel: tpu_custom_call.1
$region0: #{tpu_custom_call.1}
  #allocation0 [shape = 'u32[]', space=smem, size = 0x4, offset = 0x4, fixed_abs, tag = 'smem constant byte address 0x4 - core index']
  #allocation1 [shape = 'u32[144,128]{1,0:T(1,128)}', space=vmem, size = 0x12000, scoped, tag = 'internal scratch']
  %s0 = inlined_call_operand.vmem [shape: f32[4,512], index: 0, kind: input, shape index: {}]
  %s1 = inlined_call_operand.vmem [shape: f32[128,4], index: 1, kind: input, shape index: {}]
  %s2 = inlined_call_operand.vmem [shape: f32[4,128], index: 2, kind: input, shape index: {}]
  %s3 = inlined_call_operand.vmem [shape: f32[128,1], index: 3, kind: input, shape index: {}]
  %s4 = inlined_call_operand.hbm [shape: f32[4,512], index: 4, kind: output, shape index: {0}]
  %s5 = inlined_call_operand.hbm [shape: s32[1,512], index: 5, kind: output, shape index: {1}]
  %6 = xla_tuple %s4, %s5
  %s7 = sld [smem:[#allocation0]]
  $region34: #{tpu_custom_call.1} parent=0
    _
  %s9 = ssub.s32 1, %s7
  %s10 = scalar_select 0, %s9, %s7
  $region1: #{tpu_custom_call.1} parent=0
    #allocation2 [shape = 'u8[8192]{0}', space=vmem, size = 0x2000, scoped, tag = 'output window, operand 0, single buffered']
    #allocation3 [shape = 's32[1]{0}', space=sflag, size = 0x4, scoped, tag = 'scoped memory for tpu_custom_call.1']
    #allocation4 [shape = 'u8[2048]{0}', space=vmem, size = 0x800, scoped, tag = 'output window, operand 1, single buffered']
    #allocation5 [shape = 's32[1]{0}', space=sflag, size = 0x4, scoped, tag = 'scoped memory for tpu_custom_call.1']
    %11 = vsyncpa [#allocation3], 0
    %12 = vsyncpa [#allocation5], 0
    // Predicated region
    $region2: #{tpu_custom_call.1} parent=1 // pred_check
      _
    $region3: #{tpu_custom_call.1} parent=1 // pred_check_branch
      %14 = sbr.rel (0) target = $region5
    $region4: #{tpu_custom_call.1} parent=1 // pred_region
      _
    $region5: #{tpu_custom_call.1} parent=1 // pred_fallthru
      _
    // Predicated region
    $region6: #{tpu_custom_call.1} parent=1 // pred_check
      _
    $region7: #{tpu_custom_call.1} parent=1 // pred_check_branch
      %16 = sbr.rel (0) target = $region9
    $region8: #{tpu_custom_call.1} parent=1 // pred_region
      _
    $region9: #{tpu_custom_call.1} parent=1 // pred_fallthru
      _
    // Predicated region
    $region10: #{tpu_custom_call.1} parent=1 // pred_check
      _
    $region11: #{tpu_custom_call.1} parent=1 // pred_check_branch
      %18 = sbr.rel (0) target = $region13
    $region12: #{tpu_custom_call.1} parent=1 // pred_region
      _
    $region13: #{tpu_custom_call.1} parent=1 // pred_fallthru
      _
    // Predicated region
    $region14: #{tpu_custom_call.1} parent=1 // pred_check
      _
    $region15: #{tpu_custom_call.1} parent=1 // pred_check_branch
      %20 = sbr.rel (0) target = $region17
    $region16: #{tpu_custom_call.1} parent=1 // pred_region
      _
    $region17: #{tpu_custom_call.1} parent=1 // pred_fallthru
      _
    %v21 = vld [vmem:[%s0] sm:$0xff]
    %v22 = vld [vmem:[%s0 + $0x8] sm:$0xff]
    %v23 = vld [vmem:[%s1] sm:$0xff]
    %v24 = vld [vmem:[%s1 + $0x8] sm:$0xff]
    %v25 = vld [vmem:[%s1 + $0x10] sm:$0xff]
    %v26 = vld [vmem:[%s1 + $0x18] sm:$0xff]
    %v27 = vld [vmem:[%s1 + $0x20] sm:$0xff]
    %v28 = vld [vmem:[%s1 + $0x28] sm:$0xff]
    %v29 = vld [vmem:[%s1 + $0x30] sm:$0xff]
    %v30 = vld [vmem:[%s1 + $0x38] sm:$0xff]
    %v31 = vld [vmem:[%s1 + $0x40] sm:$0xff]
    %v32 = vld [vmem:[%s1 + $0x48] sm:$0xff]
    %v33 = vld [vmem:[%s1 + $0x50] sm:$0xff]
    %v34 = vld [vmem:[%s1 + $0x58] sm:$0xff]
    %v35 = vld [vmem:[%s1 + $0x60] sm:$0xff]
    %v36 = vld [vmem:[%s1 + $0x68] sm:$0xff]
    %v37 = vld [vmem:[%s1 + $0x70] sm:$0xff]
    %v38 = vld [vmem:[%s1 + $0x78] sm:$0xff]
    %v39 = vld [vmem:[%s2] sm:$0xf]
    %v40 = vld [vmem:[%s3] sm:$0xff]
    %v41 = vld [vmem:[%s3 + $0x8] sm:$0xff]
    %v42 = vld [vmem:[%s3 + $0x10] sm:$0xff]
    %v43 = vld [vmem:[%s3 + $0x18] sm:$0xff]
    %v44 = vld [vmem:[%s3 + $0x20] sm:$0xff]
    %v45 = vld [vmem:[%s3 + $0x28] sm:$0xff]
    %v46 = vld [vmem:[%s3 + $0x30] sm:$0xff]
    %v47 = vld [vmem:[%s3 + $0x38] sm:$0xff]
    %v48 = vld [vmem:[%s3 + $0x40] sm:$0xff]
    %v49 = vld [vmem:[%s3 + $0x48] sm:$0xff]
    %v50 = vld [vmem:[%s3 + $0x50] sm:$0xff]
    %v51 = vld [vmem:[%s3 + $0x58] sm:$0xff]
    %v52 = vld [vmem:[%s3 + $0x60] sm:$0xff]
    %v53 = vld [vmem:[%s3 + $0x68] sm:$0xff]
    %v54 = vld [vmem:[%s3 + $0x70] sm:$0xff]
    %v55 = vld [vmem:[%s3 + $0x78] sm:$0xff]
    %v58 = vcombine.high %v21, %v21
    %v59 = vcombine.high %v22, %v22
    %vm60 = vcmask 31744
    %v62 = vsel %vm60, %v23, 0
    %v65 = vsel %vm60, %v24, 0
    %v68 = vsel %vm60, %v25, 0
    %v71 = vsel %vm60, %v26, 0
    %v74 = vsel %vm60, %v27, 0
    %v77 = vsel %vm60, %v28, 0
    %v80 = vsel %vm60, %v29, 0
    %v83 = vsel %vm60, %v30, 0
    %v86 = vsel %vm60, %v31, 0
    %v89 = vsel %vm60, %v32, 0
    %v92 = vsel %vm60, %v33, 0
    %v95 = vsel %vm60, %v34, 0
    %v98 = vsel %vm60, %v35, 0
    %v101 = vsel %vm60, %v36, 0
    %v104 = vsel %vm60, %v37, 0
    %v107 = vsel %vm60, %v38, 0
    %vm109 = vcmask 1043456
    %v110 = vsel %vm109, %v21, 0
    %v112 = vsel %vm109, %v58, 0
    %v114 = vsel %vm109, %v22, 0
    %v116 = vsel %vm109, %v59, 0
    %118 = vmatprep.subr.mxu0 %v112
    %119 = vmatpush1.msra.mxu0 %v110
    %120 = vmatprep.subr.mxu0 0.0
    %121 = vmatpush1.msra.mxu0 0.0
    %122 = vmatprep.subr.mxu0 0.0
    %123 = vmatpush1.msra.mxu0 0.0
    %124 = vmatprep.subr.mxu0 0.0
    %125 = vmatpush1.msra.mxu0 0.0
    %126 = vmatprep.subr.mxu0 0.0
    %127 = vmatpush1.msra.mxu0 0.0
    %128 = vmatprep.subr.mxu0 0.0
    %129 = vmatpush1.msra.mxu0 0.0
    %130 = vmatprep.subr.mxu0 0.0
    %131 = vmatpush1.msra.mxu0 0.0
    %132 = vmatprep.subr.mxu0 0.0
    %133 = vmatpush1.msra.mxu0 0.0
    %134 = vmatprep.subr.mxu0 0.0
    %135 = vmatpush1.msra.mxu0 0.0
    %136 = vmatprep.subr.mxu0 0.0
    %137 = vmatpush1.msra.mxu0 0.0
    %138 = vmatprep.subr.mxu0 0.0
    %139 = vmatpush1.msra.mxu0 0.0
    %140 = vmatprep.subr.mxu0 0.0
    %141 = vmatpush1.msra.mxu0 0.0
    %142 = vmatprep.subr.mxu0 0.0
    %143 = vmatpush1.msra.mxu0 0.0
    %144 = vmatprep.subr.mxu0 0.0
    %145 = vmatpush1.msra.mxu0 0.0
    %146 = vmatprep.subr.mxu0 0.0
    %147 = vmatpush1.msra.mxu0 0.0
    %148 = vmatprep.subr.mxu0 0.0
    %149 = vmatpush1.msra.mxu0 0.0
    %150 = vmatprep.subr.mxu0 0.0
    %151 = vmatpush1.msra.mxu0 0.0
    %152 = vmatprep.subr.mxu0 0.0
    %153 = vmatpush1.msra.mxu0 0.0
    %154 = vmatprep.subr.mxu0 0.0
    %155 = vmatpush1.msra.mxu0 0.0
    %156 = vmatprep.subr.mxu0 0.0
    %157 = vmatpush1.msra.mxu0 0.0
    %158 = vmatprep.subr.mxu0 0.0
    %159 = vmatpush1.msra.mxu0 0.0
    %160 = vmatprep.subr.mxu0 0.0
    %161 = vmatpush1.msra.mxu0 0.0
    %162 = vmatprep.subr.mxu0 0.0
    %163 = vmatpush1.msra.mxu0 0.0
    %164 = vmatprep.subr.mxu0 0.0
    %165 = vmatpush1.msra.mxu0 0.0
    %166 = vmatprep.subr.mxu0 0.0
    %167 = vmatpush1.msra.mxu0 0.0
    %168 = vmatprep.subr.mxu0 0.0
    %169 = vmatpush1.msra.mxu0 0.0
    %170 = vmatprep.subr.mxu0 0.0
    %171 = vmatpush1.msra.mxu0 0.0
    %172 = vmatprep.subr.mxu0 0.0
    %173 = vmatpush1.msra.mxu0 0.0
    %174 = vmatprep.subr.mxu0 0.0
    %175 = vmatpush1.msra.mxu0 0.0
    %176 = vmatprep.subr.mxu0 0.0
    %177 = vmatpush1.msra.mxu0 0.0
    %178 = vmatprep.subr.mxu0 0.0
    %179 = vmatpush1.msra.mxu0 0.0
    %180 = vmatprep.subr.mxu0 0.0
    %181 = vmatpush1.msra.mxu0 0.0
    %182 = vmatprep.mubr.f32.mxu0 0.0
    %183 = vmatmul.mubr.f32.gmra.mrb[0].mxu0 %v62
    %v184 = vpop.f32.mrb[0].mxu0
    %v185 = vadd.f32 0.0, %v184
    %v186 = vpop.f32.mrb[0].mxu0
    %v187 = vadd.f32 0.0, %v186
    %188 = vmatprep.mubr.f32.mxu0 0.0
    %189 = vmatmul.mubr.f32.gmra.mrb[0].mxu0 %v65
    %v190 = vpop.f32.mrb[0].mxu0
    %v191 = vadd.f32 0.0, %v190
    %v192 = vpop.f32.mrb[0].mxu0
    %v193 = vadd.f32 0.0, %v192
    %194 = vmatprep.mubr.f32.mxu0 0.0
    %195 = vmatmul.mubr.f32.gmra.mrb[0].mxu0 %v68
    %v196 = vpop.f32.mrb[0].mxu0
    %v197 = vadd.f32 0.0, %v196
    %v198 = vpop.f32.mrb[0].mxu0
    %v199 = vadd.f32 0.0, %v198
    %200 = vmatprep.mubr.f32.mxu0 0.0
    %201 = vmatmul.mubr.f32.gmra.mrb[0].mxu0 %v71
    %v202 = vpop.f32.mrb[0].mxu0
    %v203 = vadd.f32 0.0, %v202
    %v204 = vpop.f32.mrb[0].mxu0
    %v205 = vadd.f32 0.0, %v204
    %206 = vmatprep.mubr.f32.mxu0 0.0
    %207 = vmatmul.mubr.f32.gmra.mrb[0].mxu0 %v74
    %v208 = vpop.f32.mrb[0].mxu0
    %v209 = vadd.f32 0.0, %v208
    %v210 = vpop.f32.mrb[0].mxu0
    %v211 = vadd.f32 0.0, %v210
    %212 = vmatprep.mubr.f32.mxu0 0.0
    %213 = vmatmul.mubr.f32.gmra.mrb[0].mxu0 %v77
    %v214 = vpop.f32.mrb[0].mxu0
    %v215 = vadd.f32 0.0, %v214
    %v216 = vpop.f32.mrb[0].mxu0
    %v217 = vadd.f32 0.0, %v216
    %218 = vmatprep.mubr.f32.mxu0 0.0
    %219 = vmatmul.mubr.f32.gmra.mrb[0].mxu0 %v80
    %v220 = vpop.f32.mrb[0].mxu0
    %v221 = vadd.f32 0.0, %v220
    %v222 = vpop.f32.mrb[0].mxu0
    %v223 = vadd.f32 0.0, %v222
    %224 = vmatprep.mubr.f32.mxu0 0.0
    %225 = vmatmul.mubr.f32.gmra.mrb[0].mxu0 %v83
    %v226 = vpop.f32.mrb[0].mxu0
    %v227 = vadd.f32 0.0, %v226
    %v228 = vpop.f32.mrb[0].mxu0
    %v229 = vadd.f32 0.0, %v228
    %230 = vmatprep.mubr.f32.mxu0 0.0
    %231 = vmatmul.mubr.f32.gmra.mrb[0].mxu0 %v86
    %v232 = vpop.f32.mrb[0].mxu0
    %v233 = vadd.f32 0.0, %v232
    %v234 = vpop.f32.mrb[0].mxu0
    %v235 = vadd.f32 0.0, %v234
    %236 = vmatprep.mubr.f32.mxu0 0.0
    %237 = vmatmul.mubr.f32.gmra.mrb[0].mxu0 %v89
    %v238 = vpop.f32.mrb[0].mxu0
    %v239 = vadd.f32 0.0, %v238
    %v240 = vpop.f32.mrb[0].mxu0
    %v241 = vadd.f32 0.0, %v240
    %242 = vmatprep.mubr.f32.mxu0 0.0
    %243 = vmatmul.mubr.f32.gmra.mrb[0].mxu0 %v92
    %v244 = vpop.f32.mrb[0].mxu0
    %v245 = vadd.f32 0.0, %v244
    %v246 = vpop.f32.mrb[0].mxu0
    %v247 = vadd.f32 0.0, %v246
    %248 = vmatprep.mubr.f32.mxu0 0.0
    %249 = vmatmul.mubr.f32.gmra.mrb[0].mxu0 %v95
    %v250 = vpop.f32.mrb[0].mxu0
    %v251 = vadd.f32 0.0, %v250
    %v252 = vpop.f32.mrb[0].mxu0
    %v253 = vadd.f32 0.0, %v252
    %254 = vmatprep.mubr.f32.mxu0 0.0
    %255 = vmatmul.mubr.f32.gmra.mrb[0].mxu0 %v98
    %v256 = vpop.f32.mrb[0].mxu0
    %v257 = vadd.f32 0.0, %v256
    %v258 = vpop.f32.mrb[0].mxu0
    %v259 = vadd.f32 0.0, %v258
    %260 = vmatprep.mubr.f32.mxu0 0.0
    %261 = vmatmul.mubr.f32.gmra.mrb[0].mxu0 %v101
    %v262 = vpop.f32.mrb[0].mxu0
    %v263 = vadd.f32 0.0, %v262
    %v264 = vpop.f32.mrb[0].mxu0
    %v265 = vadd.f32 0.0, %v264
    %266 = vmatprep.mubr.f32.mxu0 0.0
    %267 = vmatmul.mubr.f32.gmra.mrb[0].mxu0 %v104
    %v268 = vpop.f32.mrb[0].mxu0
    %v269 = vadd.f32 0.0, %v268
    %v270 = vpop.f32.mrb[0].mxu0
    %v271 = vadd.f32 0.0, %v270
    %272 = vmatprep.mubr.f32.mxu0 0.0
    %273 = vmatmul.mubr.f32.gmra.mrb[0].mxu0 %v107
    %v274 = vpop.f32.mrb[0].mxu0
    %v275 = vadd.f32 0.0, %v274
    %v276 = vpop.f32.mrb[0].mxu0
    %v277 = vadd.f32 0.0, %v276
    %278 = vdwg.mxu0
    %279 = vmatprep.subr.mxu0 %v116
    %280 = vmatpush1.msra.mxu0 %v114
    %281 = vmatprep.subr.mxu0 0.0
    %282 = vmatpush1.msra.mxu0 0.0
    %283 = vmatprep.subr.mxu0 0.0
    %284 = vmatpush1.msra.mxu0 0.0
    %285 = vmatprep.subr.mxu0 0.0
    %286 = vmatpush1.msra.mxu0 0.0
    %287 = vmatprep.subr.mxu0 0.0
    %288 = vmatpush1.msra.mxu0 0.0
    %289 = vmatprep.subr.mxu0 0.0
    %290 = vmatpush1.msra.mxu0 0.0
    %291 = vmatprep.subr.mxu0 0.0
    %292 = vmatpush1.msra.mxu0 0.0
    %293 = vmatprep.subr.mxu0 0.0
    %294 = vmatpush1.msra.mxu0 0.0
    %295 = vmatprep.subr.mxu0 0.0
    %296 = vmatpush1.msra.mxu0 0.0
    %297 = vmatprep.subr.mxu0 0.0
    %298 = vmatpush1.msra.mxu0 0.0
    %299 = vmatprep.subr.mxu0 0.0
    %300 = vmatpush1.msra.mxu0 0.0
    %301 = vmatprep.subr.mxu0 0.0
    %302 = vmatpush1.msra.mxu0 0.0
    %303 = vmatprep.subr.mxu0 0.0
    %304 = vmatpush1.msra.mxu0 0.0
    %305 = vmatprep.subr.mxu0 0.0
    %306 = vmatpush1.msra.mxu0 0.0
    %307 = vmatprep.subr.mxu0 0.0
    %308 = vmatpush1.msra.mxu0 0.0
    %309 = vmatprep.subr.mxu0 0.0
    %310 = vmatpush1.msra.mxu0 0.0
    %311 = vmatprep.subr.mxu0 0.0
    %312 = vmatpush1.msra.mxu0 0.0
    %313 = vmatprep.subr.mxu0 0.0
    %314 = vmatpush1.msra.mxu0 0.0
    %315 = vmatprep.subr.mxu0 0.0
    %316 = vmatpush1.msra.mxu0 0.0
    %317 = vmatprep.subr.mxu0 0.0
    %318 = vmatpush1.msra.mxu0 0.0
    %319 = vmatprep.subr.mxu0 0.0
    %320 = vmatpush1.msra.mxu0 0.0
    %321 = vmatprep.subr.mxu0 0.0
    %322 = vmatpush1.msra.mxu0 0.0
    %323 = vmatprep.subr.mxu0 0.0
    %324 = vmatpush1.msra.mxu0 0.0
    %325 = vmatprep.subr.mxu0 0.0
    %326 = vmatpush1.msra.mxu0 0.0
    %327 = vmatprep.subr.mxu0 0.0
    %328 = vmatpush1.msra.mxu0 0.0
    %329 = vmatprep.subr.mxu0 0.0
    %330 = vmatpush1.msra.mxu0 0.0
    %331 = vmatprep.subr.mxu0 0.0
    %332 = vmatpush1.msra.mxu0 0.0
    %333 = vmatprep.subr.mxu0 0.0
    %334 = vmatpush1.msra.mxu0 0.0
    %335 = vmatprep.subr.mxu0 0.0
    %336 = vmatpush1.msra.mxu0 0.0
    %337 = vmatprep.subr.mxu0 0.0
    %338 = vmatpush1.msra.mxu0 0.0
    %339 = vmatprep.subr.mxu0 0.0
    %340 = vmatpush1.msra.mxu0 0.0
    %341 = vmatprep.subr.mxu0 0.0
    %342 = vmatpush1.msra.mxu0 0.0
    %343 = vmatprep.mubr.f32.mxu0 0.0
    %344 = vmatmul.mubr.f32.gmra.mrb[0].mxu0 %v62
    %v345 = vpop.f32.mrb[0].mxu0
    %v346 = vadd.f32 0.0, %v345
    %v347 = vpop.f32.mrb[0].mxu0
    %v348 = vadd.f32 0.0, %v347
    %349 = vmatprep.mubr.f32.mxu0 0.0
    %350 = vmatmul.mubr.f32.gmra.mrb[0].mxu0 %v65
    %v351 = vpop.f32.mrb[0].mxu0
    %v352 = vadd.f32 0.0, %v351
    %v353 = vpop.f32.mrb[0].mxu0
    %v354 = vadd.f32 0.0, %v353
    %355 = vmatprep.mubr.f32.mxu0 0.0
    %356 = vmatmul.mubr.f32.gmra.mrb[0].mxu0 %v68
    %v357 = vpop.f32.mrb[0].mxu0
    %v358 = vadd.f32 0.0, %v357
    %v359 = vpop.f32.mrb[0].mxu0
    %v360 = vadd.f32 0.0, %v359
    %361 = vmatprep.mubr.f32.mxu0 0.0
    %362 = vmatmul.mubr.f32.gmra.mrb[0].mxu0 %v71
    %v363 = vpop.f32.mrb[0].mxu0
    %v364 = vadd.f32 0.0, %v363
    %v365 = vpop.f32.mrb[0].mxu0
    %v366 = vadd.f32 0.0, %v365
    %367 = vmatprep.mubr.f32.mxu0 0.0
    %368 = vmatmul.mubr.f32.gmra.mrb[0].mxu0 %v74
    %v369 = vpop.f32.mrb[0].mxu0
    %v370 = vadd.f32 0.0, %v369
    %v371 = vpop.f32.mrb[0].mxu0
    %v372 = vadd.f32 0.0, %v371
    %373 = vmatprep.mubr.f32.mxu0 0.0
    %374 = vmatmul.mubr.f32.gmra.mrb[0].mxu0 %v77
    %v375 = vpop.f32.mrb[0].mxu0
    %v376 = vadd.f32 0.0, %v375
    %v377 = vpop.f32.mrb[0].mxu0
    %v378 = vadd.f32 0.0, %v377
    %379 = vmatprep.mubr.f32.mxu0 0.0
    %380 = vmatmul.mubr.f32.gmra.mrb[0].mxu0 %v80
    %v381 = vpop.f32.mrb[0].mxu0
    %v382 = vadd.f32 0.0, %v381
    %v383 = vpop.f32.mrb[0].mxu0
    %v384 = vadd.f32 0.0, %v383
    %385 = vmatprep.mubr.f32.mxu0 0.0
    %386 = vmatmul.mubr.f32.gmra.mrb[0].mxu0 %v83
    %v387 = vpop.f32.mrb[0].mxu0
    %v388 = vadd.f32 0.0, %v387
    %v389 = vpop.f32.mrb[0].mxu0
    %v390 = vadd.f32 0.0, %v389
    %391 = vmatprep.mubr.f32.mxu0 0.0
    %392 = vmatmul.mubr.f32.gmra.mrb[0].mxu0 %v86
    %v393 = vpop.f32.mrb[0].mxu0
    %v394 = vadd.f32 0.0, %v393
    %v395 = vpop.f32.mrb[0].mxu0
    %v396 = vadd.f32 0.0, %v395
    %397 = vmatprep.mubr.f32.mxu0 0.0
    %398 = vmatmul.mubr.f32.gmra.mrb[0].mxu0 %v89
    %v399 = vpop.f32.mrb[0].mxu0
    %v400 = vadd.f32 0.0, %v399
    %v401 = vpop.f32.mrb[0].mxu0
    %v402 = vadd.f32 0.0, %v401
    %403 = vmatprep.mubr.f32.mxu0 0.0
    %404 = vmatmul.mubr.f32.gmra.mrb[0].mxu0 %v92
    %v405 = vpop.f32.mrb[0].mxu0
    %v406 = vadd.f32 0.0, %v405
    %v407 = vpop.f32.mrb[0].mxu0
    %v408 = vadd.f32 0.0, %v407
    %409 = vmatprep.mubr.f32.mxu0 0.0
    %410 = vmatmul.mubr.f32.gmra.mrb[0].mxu0 %v95
    %v411 = vpop.f32.mrb[0].mxu0
    %v412 = vadd.f32 0.0, %v411
    %v413 = vpop.f32.mrb[0].mxu0
    %v414 = vadd.f32 0.0, %v413
    %415 = vmatprep.mubr.f32.mxu0 0.0
    %416 = vmatmul.mubr.f32.gmra.mrb[0].mxu0 %v98
    %v417 = vpop.f32.mrb[0].mxu0
    %v418 = vadd.f32 0.0, %v417
    %v419 = vpop.f32.mrb[0].mxu0
    %v420 = vadd.f32 0.0, %v419
    %421 = vmatprep.mubr.f32.mxu0 0.0
    %422 = vmatmul.mubr.f32.gmra.mrb[0].mxu0 %v101
    %v423 = vpop.f32.mrb[0].mxu0
    %v424 = vadd.f32 0.0, %v423
    %v425 = vpop.f32.mrb[0].mxu0
    %v426 = vadd.f32 0.0, %v425
    %427 = vmatprep.mubr.f32.mxu0 0.0
    %428 = vmatmul.mubr.f32.gmra.mrb[0].mxu0 %v104
    %v429 = vpop.f32.mrb[0].mxu0
    %v430 = vadd.f32 0.0, %v429
    %v431 = vpop.f32.mrb[0].mxu0
    %v432 = vadd.f32 0.0, %v431
    %433 = vmatprep.mubr.f32.mxu0 0.0
    %434 = vmatmul.mubr.f32.gmra.mrb[0].mxu0 %v107
    %v435 = vpop.f32.mrb[0].mxu0
    %v436 = vadd.f32 0.0, %v435
    %v437 = vpop.f32.mrb[0].mxu0
    %v438 = vadd.f32 0.0, %v437
    %439 = vdwg.mxu0
    %v440 = vmul.f32 %v185, 2.0
    %v441 = vmul.f32 %v187, 2.0
    %v442 = vmul.f32 %v346, 2.0
    %v443 = vmul.f32 %v348, 2.0
    %v444 = vmul.f32 %v191, 2.0
    %v445 = vmul.f32 %v193, 2.0
    %v446 = vmul.f32 %v352, 2.0
    %v447 = vmul.f32 %v354, 2.0
    %v448 = vmul.f32 %v197, 2.0
    %v449 = vmul.f32 %v199, 2.0
    %v450 = vmul.f32 %v358, 2.0
    %v451 = vmul.f32 %v360, 2.0
    %v452 = vmul.f32 %v203, 2.0
    %v453 = vmul.f32 %v205, 2.0
    %v454 = vmul.f32 %v364, 2.0
    %v455 = vmul.f32 %v366, 2.0
    %v456 = vmul.f32 %v209, 2.0
    %v457 = vmul.f32 %v211, 2.0
    %v458 = vmul.f32 %v370, 2.0
    %v459 = vmul.f32 %v372, 2.0
    %v460 = vmul.f32 %v215, 2.0
    %v461 = vmul.f32 %v217, 2.0
    %v462 = vmul.f32 %v376, 2.0
    %v463 = vmul.f32 %v378, 2.0
    %v464 = vmul.f32 %v221, 2.0
    %v465 = vmul.f32 %v223, 2.0
    %v466 = vmul.f32 %v382, 2.0
    %v467 = vmul.f32 %v384, 2.0
    %v468 = vmul.f32 %v227, 2.0
    %v469 = vmul.f32 %v229, 2.0
    %v470 = vmul.f32 %v388, 2.0
    %v471 = vmul.f32 %v390, 2.0
    %v472 = vmul.f32 %v233, 2.0
    %v473 = vmul.f32 %v235, 2.0
    %v474 = vmul.f32 %v394, 2.0
    %v475 = vmul.f32 %v396, 2.0
    %v476 = vmul.f32 %v239, 2.0
    %v477 = vmul.f32 %v241, 2.0
    %v478 = vmul.f32 %v400, 2.0
    %v479 = vmul.f32 %v402, 2.0
    %v480 = vmul.f32 %v245, 2.0
    %v481 = vmul.f32 %v247, 2.0
    %v482 = vmul.f32 %v406, 2.0
    %v483 = vmul.f32 %v408, 2.0
    %v484 = vmul.f32 %v251, 2.0
    %v485 = vmul.f32 %v253, 2.0
    %v486 = vmul.f32 %v412, 2.0
    %v487 = vmul.f32 %v414, 2.0
    %v488 = vmul.f32 %v257, 2.0
    %v489 = vmul.f32 %v259, 2.0
    %v490 = vmul.f32 %v418, 2.0
    %v491 = vmul.f32 %v420, 2.0
    %v492 = vmul.f32 %v263, 2.0
    %v493 = vmul.f32 %v265, 2.0
    %v494 = vmul.f32 %v424, 2.0
    %v495 = vmul.f32 %v426, 2.0
    %v496 = vmul.f32 %v269, 2.0
    %v497 = vmul.f32 %v271, 2.0
    %v498 = vmul.f32 %v430, 2.0
    %v499 = vmul.f32 %v432, 2.0
    %v500 = vmul.f32 %v275, 2.0
    %v501 = vmul.f32 %v277, 2.0
    %v502 = vmul.f32 %v436, 2.0
    %v503 = vmul.f32 %v438, 2.0
    %505 = vset.pattern.permute.xlu0 0
    %506 = vperm.xlu0 %505, %v40
    %v507 = vpop.permute.xlu0 %506
    %510 = vset.pattern.permute.xlu0 0
    %511 = vperm.xlu0 %510, %v41
    %v512 = vpop.permute.xlu0 %511
    %515 = vset.pattern.permute.xlu0 0
    %516 = vperm.xlu0 %515, %v42
    %v517 = vpop.permute.xlu0 %516
    %520 = vset.pattern.permute.xlu0 0
    %521 = vperm.xlu0 %520, %v43
    %v522 = vpop.permute.xlu0 %521
    %525 = vset.pattern.permute.xlu0 0
    %526 = vperm.xlu0 %525, %v44
    %v527 = vpop.permute.xlu0 %526
    %530 = vset.pattern.permute.xlu0 0
    %531 = vperm.xlu0 %530, %v45
    %v532 = vpop.permute.xlu0 %531
    %535 = vset.pattern.permute.xlu0 0
    %536 = vperm.xlu0 %535, %v46
    %v537 = vpop.permute.xlu0 %536
    %540 = vset.pattern.permute.xlu0 0
    %541 = vperm.xlu0 %540, %v47
    %v542 = vpop.permute.xlu0 %541
    %545 = vset.pattern.permute.xlu0 0
    %546 = vperm.xlu0 %545, %v48
    %v547 = vpop.permute.xlu0 %546
    %550 = vset.pattern.permute.xlu0 0
    %551 = vperm.xlu0 %550, %v49
    %v552 = vpop.permute.xlu0 %551
    %555 = vset.pattern.permute.xlu0 0
    %556 = vperm.xlu0 %555, %v50
    %v557 = vpop.permute.xlu0 %556
    %560 = vset.pattern.permute.xlu0 0
    %561 = vperm.xlu0 %560, %v51
    %v562 = vpop.permute.xlu0 %561
    %565 = vset.pattern.permute.xlu0 0
    %566 = vperm.xlu0 %565, %v52
    %v567 = vpop.permute.xlu0 %566
    %570 = vset.pattern.permute.xlu0 0
    %571 = vperm.xlu0 %570, %v53
    %v572 = vpop.permute.xlu0 %571
    %575 = vset.pattern.permute.xlu0 0
    %576 = vperm.xlu0 %575, %v54
    %v577 = vpop.permute.xlu0 %576
    %580 = vset.pattern.permute.xlu0 0
    %581 = vperm.xlu0 %580, %v55
    %v582 = vpop.permute.xlu0 %581
    %v584 = vsub.f32 %v507, %v440
    %v585 = vsub.f32 %v507, %v441
    %v586 = vsub.f32 %v507, %v442
    %v587 = vsub.f32 %v507, %v443
    %v588 = vsub.f32 %v512, %v444
    %v589 = vsub.f32 %v512, %v445
    %v590 = vsub.f32 %v512, %v446
    %v591 = vsub.f32 %v512, %v447
    %v592 = vsub.f32 %v517, %v448
    %v593 = vsub.f32 %v517, %v449
    %v594 = vsub.f32 %v517, %v450
    %v595 = vsub.f32 %v517, %v451
    %v596 = vsub.f32 %v522, %v452
    %v597 = vsub.f32 %v522, %v453
    %v598 = vsub.f32 %v522, %v454
    %v599 = vsub.f32 %v522, %v455
    %v600 = vsub.f32 %v527, %v456
    %v601 = vsub.f32 %v527, %v457
    %v602 = vsub.f32 %v527, %v458
    %v603 = vsub.f32 %v527, %v459
    %v604 = vsub.f32 %v532, %v460
    %v605 = vsub.f32 %v532, %v461
    %v606 = vsub.f32 %v532, %v462
    %v607 = vsub.f32 %v532, %v463
    %v608 = vsub.f32 %v537, %v464
    %v609 = vsub.f32 %v537, %v465
    %v610 = vsub.f32 %v537, %v466
    %v611 = vsub.f32 %v537, %v467
    %v612 = vsub.f32 %v542, %v468
    %v613 = vsub.f32 %v542, %v469
    %v614 = vsub.f32 %v542, %v470
    %v615 = vsub.f32 %v542, %v471
    %v616 = vsub.f32 %v547, %v472
    %v617 = vsub.f32 %v547, %v473
    %v618 = vsub.f32 %v547, %v474
    %v619 = vsub.f32 %v547, %v475
    %v620 = vsub.f32 %v552, %v476
    %v621 = vsub.f32 %v552, %v477
    %v622 = vsub.f32 %v552, %v478
    %v623 = vsub.f32 %v552, %v479
    %v624 = vsub.f32 %v557, %v480
    %v625 = vsub.f32 %v557, %v481
    %v626 = vsub.f32 %v557, %v482
    %v627 = vsub.f32 %v557, %v483
    %v628 = vsub.f32 %v562, %v484
    %v629 = vsub.f32 %v562, %v485
    %v630 = vsub.f32 %v562, %v486
    %v631 = vsub.f32 %v562, %v487
    %v632 = vsub.f32 %v567, %v488
    %v633 = vsub.f32 %v567, %v489
    %v634 = vsub.f32 %v567, %v490
    %v635 = vsub.f32 %v567, %v491
    %v636 = vsub.f32 %v572, %v492
    %v637 = vsub.f32 %v572, %v493
    %v638 = vsub.f32 %v572, %v494
    %v639 = vsub.f32 %v572, %v495
    %v640 = vsub.f32 %v577, %v496
    %v641 = vsub.f32 %v577, %v497
    %v642 = vsub.f32 %v577, %v498
    %v643 = vsub.f32 %v577, %v499
    %v644 = vsub.f32 %v582, %v500
    %v645 = vsub.f32 %v582, %v501
    %v646 = vsub.f32 %v582, %v502
    %v647 = vsub.f32 %v582, %v503
    %v648 = vmin.f32 %v584, %v588
    %v649 = vmin.f32 %v648, %v592
    %v650 = vmin.f32 %v649, %v596
    %v651 = vmin.f32 %v650, %v600
    %v652 = vmin.f32 %v651, %v604
    %v653 = vmin.f32 %v652, %v608
    %v654 = vmin.f32 %v653, %v612
    %v655 = vmin.f32 %v654, %v616
    %v656 = vmin.f32 %v655, %v620
    %v657 = vmin.f32 %v656, %v624
    %v658 = vmin.f32 %v657, %v628
    %v659 = vmin.f32 %v658, %v632
    %v660 = vmin.f32 %v659, %v636
    %v661 = vmin.f32 %v660, %v640
    %v662 = vmin.f32 %v661, %v644
    %v663 = vrot.slane %v662, 4
    %v664 = vmin.f32 %v662, %v663
    %v665 = vrot.slane %v664, 2
    %v666 = vmin.f32 %v664, %v665
    %v667 = vrot.slane %v666, 1
    %v668 = vmin.f32 %v666, %v667
    %v669 = vmin.f32 %v585, %v589
    %v670 = vmin.f32 %v669, %v593
    %v671 = vmin.f32 %v670, %v597
    %v672 = vmin.f32 %v671, %v601
    %v673 = vmin.f32 %v672, %v605
    %v674 = vmin.f32 %v673, %v609
    %v675 = vmin.f32 %v674, %v613
    %v676 = vmin.f32 %v675, %v617
    %v677 = vmin.f32 %v676, %v621
    %v678 = vmin.f32 %v677, %v625
    %v679 = vmin.f32 %v678, %v629
    %v680 = vmin.f32 %v679, %v633
    %v681 = vmin.f32 %v680, %v637
    %v682 = vmin.f32 %v681, %v641
    %v683 = vmin.f32 %v682, %v645
    %v684 = vrot.slane %v683, 4
    %v685 = vmin.f32 %v683, %v684
    %v686 = vrot.slane %v685, 2
    %v687 = vmin.f32 %v685, %v686
    %v688 = vrot.slane %v687, 1
    %v689 = vmin.f32 %v687, %v688
    %v690 = vmin.f32 %v586, %v590
    %v691 = vmin.f32 %v690, %v594
    %v692 = vmin.f32 %v691, %v598
    %v693 = vmin.f32 %v692, %v602
    %v694 = vmin.f32 %v693, %v606
    %v695 = vmin.f32 %v694, %v610
    %v696 = vmin.f32 %v695, %v614
    %v697 = vmin.f32 %v696, %v618
    %v698 = vmin.f32 %v697, %v622
    %v699 = vmin.f32 %v698, %v626
    %v700 = vmin.f32 %v699, %v630
    %v701 = vmin.f32 %v700, %v634
    %v702 = vmin.f32 %v701, %v638
    %v703 = vmin.f32 %v702, %v642
    %v704 = vmin.f32 %v703, %v646
    %v705 = vrot.slane %v704, 4
    %v706 = vmin.f32 %v704, %v705
    %v707 = vrot.slane %v706, 2
    %v708 = vmin.f32 %v706, %v707
    %v709 = vrot.slane %v708, 1
    %v710 = vmin.f32 %v708, %v709
    %v711 = vmin.f32 %v587, %v591
    %v712 = vmin.f32 %v711, %v595
    %v713 = vmin.f32 %v712, %v599
    %v714 = vmin.f32 %v713, %v603
    %v715 = vmin.f32 %v714, %v607
    %v716 = vmin.f32 %v715, %v611
    %v717 = vmin.f32 %v716, %v615
    %v718 = vmin.f32 %v717, %v619
    %v719 = vmin.f32 %v718, %v623
    %v720 = vmin.f32 %v719, %v627
    %v721 = vmin.f32 %v720, %v631
    %v722 = vmin.f32 %v721, %v635
    %v723 = vmin.f32 %v722, %v639
    %v724 = vmin.f32 %v723, %v643
    %v725 = vmin.f32 %v724, %v647
    %v726 = vrot.slane %v725, 4
    %v727 = vmin.f32 %v725, %v726
    %v728 = vrot.slane %v727, 2
    %v729 = vmin.f32 %v727, %v728
    %v730 = vrot.slane %v729, 1
    %v731 = vmin.f32 %v729, %v730
    %v732 = vlaneseq
    %v733 = vshrl.u32 %v732, 7
    %v734 = vadd.s32 %v733, 8
    %v735 = vadd.s32 %v733, 16
    %v736 = vadd.s32 %v733, 24
    %v737 = vadd.s32 %v733, 32
    %v738 = vadd.s32 %v733, 40
    %v739 = vadd.s32 %v733, 48
    %v740 = vadd.s32 %v733, 56
    %v741 = vadd.s32 %v733, 64
    %v742 = vadd.s32 %v733, 72
    %v743 = vadd.s32 %v733, 80
    %v744 = vadd.s32 %v733, 88
    %v745 = vadd.s32 %v733, 96
    %v746 = vadd.s32 %v733, 104
    %v747 = vadd.s32 %v733, 112
    %v748 = vadd.s32 %v733, 120
    %v749 = vcvt.s32.f32 %v733
    %v750 = vcvt.s32.f32 %v734
    %v751 = vcvt.s32.f32 %v735
    %v752 = vcvt.s32.f32 %v736
    %v753 = vcvt.s32.f32 %v737
    %v754 = vcvt.s32.f32 %v738
    %v755 = vcvt.s32.f32 %v739
    %v756 = vcvt.s32.f32 %v740
    %v757 = vcvt.s32.f32 %v741
    %v758 = vcvt.s32.f32 %v742
    %v759 = vcvt.s32.f32 %v743
    %v760 = vcvt.s32.f32 %v744
    %v761 = vcvt.s32.f32 %v745
    %v762 = vcvt.s32.f32 %v746
    %v763 = vcvt.s32.f32 %v747
    %v764 = vcvt.s32.f32 %v748
    %vm765 = vcmp.eq.f32.partialorder %v584, %v668
    %vm766 = vcmp.eq.f32.partialorder %v585, %v689
    %vm767 = vcmp.eq.f32.partialorder %v586, %v710
    %vm768 = vcmp.eq.f32.partialorder %v587, %v731
    %vm769 = vcmp.eq.f32.partialorder %v588, %v668
    %vm770 = vcmp.eq.f32.partialorder %v589, %v689
    %vm771 = vcmp.eq.f32.partialorder %v590, %v710
    %vm772 = vcmp.eq.f32.partialorder %v591, %v731
    %vm773 = vcmp.eq.f32.partialorder %v592, %v668
    %vm774 = vcmp.eq.f32.partialorder %v593, %v689
    %vm775 = vcmp.eq.f32.partialorder %v594, %v710
    %vm776 = vcmp.eq.f32.partialorder %v595, %v731
    %vm777 = vcmp.eq.f32.partialorder %v596, %v668
    %vm778 = vcmp.eq.f32.partialorder %v597, %v689
    %vm779 = vcmp.eq.f32.partialorder %v598, %v710
    %vm780 = vcmp.eq.f32.partialorder %v599, %v731
    %vm781 = vcmp.eq.f32.partialorder %v600, %v668
    %vm782 = vcmp.eq.f32.partialorder %v601, %v689
    %vm783 = vcmp.eq.f32.partialorder %v602, %v710
    %vm784 = vcmp.eq.f32.partialorder %v603, %v731
    %vm785 = vcmp.eq.f32.partialorder %v604, %v668
    %vm786 = vcmp.eq.f32.partialorder %v605, %v689
    %vm787 = vcmp.eq.f32.partialorder %v606, %v710
    %vm788 = vcmp.eq.f32.partialorder %v607, %v731
    %vm789 = vcmp.eq.f32.partialorder %v608, %v668
    %vm790 = vcmp.eq.f32.partialorder %v609, %v689
    %vm791 = vcmp.eq.f32.partialorder %v610, %v710
    %vm792 = vcmp.eq.f32.partialorder %v611, %v731
    %vm793 = vcmp.eq.f32.partialorder %v612, %v668
    %vm794 = vcmp.eq.f32.partialorder %v613, %v689
    %vm795 = vcmp.eq.f32.partialorder %v614, %v710
    %vm796 = vcmp.eq.f32.partialorder %v615, %v731
    %vm797 = vcmp.eq.f32.partialorder %v616, %v668
    %vm798 = vcmp.eq.f32.partialorder %v617, %v689
    %vm799 = vcmp.eq.f32.partialorder %v618, %v710
    %vm800 = vcmp.eq.f32.partialorder %v619, %v731
    %vm801 = vcmp.eq.f32.partialorder %v620, %v668
    %vm802 = vcmp.eq.f32.partialorder %v621, %v689
    %vm803 = vcmp.eq.f32.partialorder %v622, %v710
    %vm804 = vcmp.eq.f32.partialorder %v623, %v731
    %vm805 = vcmp.eq.f32.partialorder %v624, %v668
    %vm806 = vcmp.eq.f32.partialorder %v625, %v689
    %vm807 = vcmp.eq.f32.partialorder %v626, %v710
    %vm808 = vcmp.eq.f32.partialorder %v627, %v731
    %vm809 = vcmp.eq.f32.partialorder %v628, %v668
    %vm810 = vcmp.eq.f32.partialorder %v629, %v689
    %vm811 = vcmp.eq.f32.partialorder %v630, %v710
    %vm812 = vcmp.eq.f32.partialorder %v631, %v731
    %vm813 = vcmp.eq.f32.partialorder %v632, %v668
    %vm814 = vcmp.eq.f32.partialorder %v633, %v689
    %vm815 = vcmp.eq.f32.partialorder %v634, %v710
    %vm816 = vcmp.eq.f32.partialorder %v635, %v731
    %vm817 = vcmp.eq.f32.partialorder %v636, %v668
    %vm818 = vcmp.eq.f32.partialorder %v637, %v689
    %vm819 = vcmp.eq.f32.partialorder %v638, %v710
    %vm820 = vcmp.eq.f32.partialorder %v639, %v731
    %vm821 = vcmp.eq.f32.partialorder %v640, %v668
    %vm822 = vcmp.eq.f32.partialorder %v641, %v689
    %vm823 = vcmp.eq.f32.partialorder %v642, %v710
    %vm824 = vcmp.eq.f32.partialorder %v643, %v731
    %vm825 = vcmp.eq.f32.partialorder %v644, %v668
    %vm826 = vcmp.eq.f32.partialorder %v645, %v689
    %vm827 = vcmp.eq.f32.partialorder %v646, %v710
    %vm828 = vcmp.eq.f32.partialorder %v647, %v731
    %v829 = vsel %vm765, %v749, 128.0
    %v830 = vsel %vm766, %v749, 128.0
    %v831 = vsel %vm767, %v749, 128.0
    %v832 = vsel %vm768, %v749, 128.0
    %v833 = vsel %vm769, %v750, 128.0
    %v834 = vsel %vm770, %v750, 128.0
    %v835 = vsel %vm771, %v750, 128.0
    %v836 = vsel %vm772, %v750, 128.0
    %v837 = vsel %vm773, %v751, 128.0
    %v838 = vsel %vm774, %v751, 128.0
    %v839 = vsel %vm775, %v751, 128.0
    %v840 = vsel %vm776, %v751, 128.0
    %v841 = vsel %vm777, %v752, 128.0
    %v842 = vsel %vm778, %v752, 128.0
    %v843 = vsel %vm779, %v752, 128.0
    %v844 = vsel %vm780, %v752, 128.0
    %v845 = vsel %vm781, %v753, 128.0
    %v846 = vsel %vm782, %v753, 128.0
    %v847 = vsel %vm783, %v753, 128.0
    %v848 = vsel %vm784, %v753, 128.0
    %v849 = vsel %vm785, %v754, 128.0
    %v850 = vsel %vm786, %v754, 128.0
    %v851 = vsel %vm787, %v754, 128.0
    %v852 = vsel %vm788, %v754, 128.0
    %v853 = vsel %vm789, %v755, 128.0
    %v854 = vsel %vm790, %v755, 128.0
    %v855 = vsel %vm791, %v755, 128.0
    %v856 = vsel %vm792, %v755, 128.0
    %v857 = vsel %vm793, %v756, 128.0
    %v858 = vsel %vm794, %v756, 128.0
    %v859 = vsel %vm795, %v756, 128.0
    %v860 = vsel %vm796, %v756, 128.0
    %v861 = vsel %vm797, %v757, 128.0
    %v862 = vsel %vm798, %v757, 128.0
    %v863 = vsel %vm799, %v757, 128.0
    %v864 = vsel %vm800, %v757, 128.0
    %v865 = vsel %vm801, %v758, 128.0
    %v866 = vsel %vm802, %v758, 128.0
    %v867 = vsel %vm803, %v758, 128.0
    %v868 = vsel %vm804, %v758, 128.0
    %v869 = vsel %vm805, %v759, 128.0
    %v870 = vsel %vm806, %v759, 128.0
    %v871 = vsel %vm807, %v759, 128.0
    %v872 = vsel %vm808, %v759, 128.0
    %v873 = vsel %vm809, %v760, 128.0
    %v874 = vsel %vm810, %v760, 128.0
    %v875 = vsel %vm811, %v760, 128.0
    %v876 = vsel %vm812, %v760, 128.0
    %v877 = vsel %vm813, %v761, 128.0
    %v878 = vsel %vm814, %v761, 128.0
    %v879 = vsel %vm815, %v761, 128.0
    %v880 = vsel %vm816, %v761, 128.0
    %v881 = vsel %vm817, %v762, 128.0
    %v882 = vsel %vm818, %v762, 128.0
    %v883 = vsel %vm819, %v762, 128.0
    %v884 = vsel %vm820, %v762, 128.0
    %v885 = vsel %vm821, %v763, 128.0
    %v886 = vsel %vm822, %v763, 128.0
    %v887 = vsel %vm823, %v763, 128.0
    %v888 = vsel %vm824, %v763, 128.0
    %v889 = vsel %vm825, %v764, 128.0
    %v890 = vsel %vm826, %v764, 128.0
    %v891 = vsel %vm827, %v764, 128.0
    %v892 = vsel %vm828, %v764, 128.0
    %v893 = vmin.f32 %v829, %v833
    %v894 = vmin.f32 %v893, %v837
    %v895 = vmin.f32 %v894, %v841
    %v896 = vmin.f32 %v895, %v845
    %v897 = vmin.f32 %v896, %v849
    %v898 = vmin.f32 %v897, %v853
    %v899 = vmin.f32 %v898, %v857
    %v900 = vmin.f32 %v899, %v861
    %v901 = vmin.f32 %v900, %v865
    %v902 = vmin.f32 %v901, %v869
    %v903 = vmin.f32 %v902, %v873
    %v904 = vmin.f32 %v903, %v877
    %v905 = vmin.f32 %v904, %v881
    %v906 = vmin.f32 %v905, %v885
    %v907 = vmin.f32 %v906, %v889
    %v908 = vrot.slane %v907, 4
    %v909 = vmin.f32 %v907, %v908
    %v910 = vrot.slane %v909, 2
    %v911 = vmin.f32 %v909, %v910
    %v912 = vrot.slane %v911, 1
    %v913 = vmin.f32 %v911, %v912
    %v914 = vmin.f32 %v830, %v834
    %v915 = vmin.f32 %v914, %v838
    %v916 = vmin.f32 %v915, %v842
    %v917 = vmin.f32 %v916, %v846
    %v918 = vmin.f32 %v917, %v850
    %v919 = vmin.f32 %v918, %v854
    %v920 = vmin.f32 %v919, %v858
    %v921 = vmin.f32 %v920, %v862
    %v922 = vmin.f32 %v921, %v866
    %v923 = vmin.f32 %v922, %v870
    %v924 = vmin.f32 %v923, %v874
    %v925 = vmin.f32 %v924, %v878
    %v926 = vmin.f32 %v925, %v882
    %v927 = vmin.f32 %v926, %v886
    %v928 = vmin.f32 %v927, %v890
    %v929 = vrot.slane %v928, 4
    %v930 = vmin.f32 %v928, %v929
    %v931 = vrot.slane %v930, 2
    %v932 = vmin.f32 %v930, %v931
    %v933 = vrot.slane %v932, 1
    %v934 = vmin.f32 %v932, %v933
    %v935 = vmin.f32 %v831, %v835
    %v936 = vmin.f32 %v935, %v839
    %v937 = vmin.f32 %v936, %v843
    %v938 = vmin.f32 %v937, %v847
    %v939 = vmin.f32 %v938, %v851
    %v940 = vmin.f32 %v939, %v855
    %v941 = vmin.f32 %v940, %v859
    %v942 = vmin.f32 %v941, %v863
    %v943 = vmin.f32 %v942, %v867
    %v944 = vmin.f32 %v943, %v871
    %v945 = vmin.f32 %v944, %v875
    %v946 = vmin.f32 %v945, %v879
    %v947 = vmin.f32 %v946, %v883
    %v948 = vmin.f32 %v947, %v887
    %v949 = vmin.f32 %v948, %v891
    %v950 = vrot.slane %v949, 4
    %v951 = vmin.f32 %v949, %v950
    %v952 = vrot.slane %v951, 2
    %v953 = vmin.f32 %v951, %v952
    %v954 = vrot.slane %v953, 1
    %v955 = vmin.f32 %v953, %v954
    %v956 = vmin.f32 %v832, %v836
    %v957 = vmin.f32 %v956, %v840
    %v958 = vmin.f32 %v957, %v844
    %v959 = vmin.f32 %v958, %v848
    %v960 = vmin.f32 %v959, %v852
    %v961 = vmin.f32 %v960, %v856
    %v962 = vmin.f32 %v961, %v860
    %v963 = vmin.f32 %v962, %v864
    %v964 = vmin.f32 %v963, %v868
    %v965 = vmin.f32 %v964, %v872
    %v966 = vmin.f32 %v965, %v876
    %v967 = vmin.f32 %v966, %v880
    %v968 = vmin.f32 %v967, %v884
    %v969 = vmin.f32 %v968, %v888
    %v970 = vmin.f32 %v969, %v892
    %v971 = vrot.slane %v970, 4
    %v972 = vmin.f32 %v970, %v971
    %v973 = vrot.slane %v972, 2
    %v974 = vmin.f32 %v972, %v973
    %v975 = vrot.slane %v974, 1
    %v976 = vmin.f32 %v974, %v975
    %v977 = vcvt.f32.s32.to.zero.pseudo %v913
    %v978 = vcvt.f32.s32.to.zero.pseudo %v934
    %v979 = vcvt.f32.s32.to.zero.pseudo %v955
    %v980 = vcvt.f32.s32.to.zero.pseudo %v976
    %vm981 = vcmp.eq.s32.totalorder %v733, %v977
    %vm982 = vcmp.eq.s32.totalorder %v733, %v978
    %vm983 = vcmp.eq.s32.totalorder %v733, %v979
    %vm984 = vcmp.eq.s32.totalorder %v733, %v980
    %vm985 = vcmp.eq.s32.totalorder %v734, %v977
    %vm986 = vcmp.eq.s32.totalorder %v734, %v978
    %vm987 = vcmp.eq.s32.totalorder %v734, %v979
    %vm988 = vcmp.eq.s32.totalorder %v734, %v980
    %vm989 = vcmp.eq.s32.totalorder %v735, %v977
    %vm990 = vcmp.eq.s32.totalorder %v735, %v978
    %vm991 = vcmp.eq.s32.totalorder %v735, %v979
    %vm992 = vcmp.eq.s32.totalorder %v735, %v980
    %vm993 = vcmp.eq.s32.totalorder %v736, %v977
    %vm994 = vcmp.eq.s32.totalorder %v736, %v978
    %vm995 = vcmp.eq.s32.totalorder %v736, %v979
    %vm996 = vcmp.eq.s32.totalorder %v736, %v980
    %vm997 = vcmp.eq.s32.totalorder %v737, %v977
    %vm998 = vcmp.eq.s32.totalorder %v737, %v978
    %vm999 = vcmp.eq.s32.totalorder %v737, %v979
    %vm1000 = vcmp.eq.s32.totalorder %v737, %v980
    %vm1001 = vcmp.eq.s32.totalorder %v738, %v977
    %vm1002 = vcmp.eq.s32.totalorder %v738, %v978
    %vm1003 = vcmp.eq.s32.totalorder %v738, %v979
    %vm1004 = vcmp.eq.s32.totalorder %v738, %v980
    %vm1005 = vcmp.eq.s32.totalorder %v739, %v977
    %vm1006 = vcmp.eq.s32.totalorder %v739, %v978
    %vm1007 = vcmp.eq.s32.totalorder %v739, %v979
    %vm1008 = vcmp.eq.s32.totalorder %v739, %v980
    %vm1009 = vcmp.eq.s32.totalorder %v740, %v977
    %vm1010 = vcmp.eq.s32.totalorder %v740, %v978
    %vm1011 = vcmp.eq.s32.totalorder %v740, %v979
    %vm1012 = vcmp.eq.s32.totalorder %v740, %v980
    %vm1013 = vcmp.eq.s32.totalorder %v741, %v977
    %vm1014 = vcmp.eq.s32.totalorder %v741, %v978
    %vm1015 = vcmp.eq.s32.totalorder %v741, %v979
    %vm1016 = vcmp.eq.s32.totalorder %v741, %v980
    %vm1017 = vcmp.eq.s32.totalorder %v742, %v977
    %vm1018 = vcmp.eq.s32.totalorder %v742, %v978
    %vm1019 = vcmp.eq.s32.totalorder %v742, %v979
    %vm1020 = vcmp.eq.s32.totalorder %v742, %v980
    %vm1021 = vcmp.eq.s32.totalorder %v743, %v977
    %vm1022 = vcmp.eq.s32.totalorder %v743, %v978
    %vm1023 = vcmp.eq.s32.totalorder %v743, %v979
    %vm1024 = vcmp.eq.s32.totalorder %v743, %v980
    %vm1025 = vcmp.eq.s32.totalorder %v744, %v977
    %vm1026 = vcmp.eq.s32.totalorder %v744, %v978
    %vm1027 = vcmp.eq.s32.totalorder %v744, %v979
    %vm1028 = vcmp.eq.s32.totalorder %v744, %v980
    %vm1029 = vcmp.eq.s32.totalorder %v745, %v977
    %vm1030 = vcmp.eq.s32.totalorder %v745, %v978
    %vm1031 = vcmp.eq.s32.totalorder %v745, %v979
    %vm1032 = vcmp.eq.s32.totalorder %v745, %v980
    %vm1033 = vcmp.eq.s32.totalorder %v746, %v977
    %vm1034 = vcmp.eq.s32.totalorder %v746, %v978
    %vm1035 = vcmp.eq.s32.totalorder %v746, %v979
    %vm1036 = vcmp.eq.s32.totalorder %v746, %v980
    %vm1037 = vcmp.eq.s32.totalorder %v747, %v977
    %vm1038 = vcmp.eq.s32.totalorder %v747, %v978
    %vm1039 = vcmp.eq.s32.totalorder %v747, %v979
    %vm1040 = vcmp.eq.s32.totalorder %v747, %v980
    %vm1041 = vcmp.eq.s32.totalorder %v748, %v977
    %vm1042 = vcmp.eq.s32.totalorder %v748, %v978
    %vm1043 = vcmp.eq.s32.totalorder %v748, %v979
    %vm1044 = vcmp.eq.s32.totalorder %v748, %v980
    %v1045 = vsel %vm981, 1, 0
    %v1046 = vsel %vm982, 1, 0
    %v1047 = vsel %vm983, 1, 0
    %v1048 = vsel %vm984, 1, 0
    %v1049 = vsel %vm985, 1, 0
    %v1050 = vsel %vm986, 1, 0
    %v1051 = vsel %vm987, 1, 0
    %v1052 = vsel %vm988, 1, 0
    %v1053 = vsel %vm989, 1, 0
    %v1054 = vsel %vm990, 1, 0
    %v1055 = vsel %vm991, 1, 0
    %v1056 = vsel %vm992, 1, 0
    %v1057 = vsel %vm993, 1, 0
    %v1058 = vsel %vm994, 1, 0
    %v1059 = vsel %vm995, 1, 0
    %v1060 = vsel %vm996, 1, 0
    %v1061 = vsel %vm997, 1, 0
    %v1062 = vsel %vm998, 1, 0
    %v1063 = vsel %vm999, 1, 0
    %v1064 = vsel %vm1000, 1, 0
    %v1065 = vsel %vm1001, 1, 0
    %v1066 = vsel %vm1002, 1, 0
    %v1067 = vsel %vm1003, 1, 0
    %v1068 = vsel %vm1004, 1, 0
    %v1069 = vsel %vm1005, 1, 0
    %v1070 = vsel %vm1006, 1, 0
    %v1071 = vsel %vm1007, 1, 0
    %v1072 = vsel %vm1008, 1, 0
    %v1073 = vsel %vm1009, 1, 0
    %v1074 = vsel %vm1010, 1, 0
    %v1075 = vsel %vm1011, 1, 0
    %v1076 = vsel %vm1012, 1, 0
    %v1077 = vsel %vm1013, 1, 0
    %v1078 = vsel %vm1014, 1, 0
    %v1079 = vsel %vm1015, 1, 0
    %v1080 = vsel %vm1016, 1, 0
    %v1081 = vsel %vm1017, 1, 0
    %v1082 = vsel %vm1018, 1, 0
    %v1083 = vsel %vm1019, 1, 0
    %v1084 = vsel %vm1020, 1, 0
    %v1085 = vsel %vm1021, 1, 0
    %v1086 = vsel %vm1022, 1, 0
    %v1087 = vsel %vm1023, 1, 0
    %v1088 = vsel %vm1024, 1, 0
    %v1089 = vsel %vm1025, 1, 0
    %v1090 = vsel %vm1026, 1, 0
    %v1091 = vsel %vm1027, 1, 0
    %v1092 = vsel %vm1028, 1, 0
    %v1093 = vsel %vm1029, 1, 0
    %v1094 = vsel %vm1030, 1, 0
    %v1095 = vsel %vm1031, 1, 0
    %v1096 = vsel %vm1032, 1, 0
    %v1097 = vsel %vm1033, 1, 0
    %v1098 = vsel %vm1034, 1, 0
    %v1099 = vsel %vm1035, 1, 0
    %v1100 = vsel %vm1036, 1, 0
    %v1101 = vsel %vm1037, 1, 0
    %v1102 = vsel %vm1038, 1, 0
    %v1103 = vsel %vm1039, 1, 0
    %v1104 = vsel %vm1040, 1, 0
    %v1105 = vsel %vm1041, 1, 0
    %v1106 = vsel %vm1042, 1, 0
    %v1107 = vsel %vm1043, 1, 0
    %v1108 = vsel %vm1044, 1, 0
    %v1109 = vcvt.s32.f32 %v1045
    %v1110 = vcvt.s32.f32 %v1046
    %v1111 = vcvt.s32.f32 %v1047
    %v1112 = vcvt.s32.f32 %v1048
    %v1113 = vcvt.s32.f32 %v1049
    %v1114 = vcvt.s32.f32 %v1050
    %v1115 = vcvt.s32.f32 %v1051
    %v1116 = vcvt.s32.f32 %v1052
    %v1117 = vcvt.s32.f32 %v1053
    %v1118 = vcvt.s32.f32 %v1054
    %v1119 = vcvt.s32.f32 %v1055
    %v1120 = vcvt.s32.f32 %v1056
    %v1121 = vcvt.s32.f32 %v1057
    %v1122 = vcvt.s32.f32 %v1058
    %v1123 = vcvt.s32.f32 %v1059
    %v1124 = vcvt.s32.f32 %v1060
    %v1125 = vcvt.s32.f32 %v1061
    %v1126 = vcvt.s32.f32 %v1062
    %v1127 = vcvt.s32.f32 %v1063
    %v1128 = vcvt.s32.f32 %v1064
    %v1129 = vcvt.s32.f32 %v1065
    %v1130 = vcvt.s32.f32 %v1066
    %v1131 = vcvt.s32.f32 %v1067
    %v1132 = vcvt.s32.f32 %v1068
    %v1133 = vcvt.s32.f32 %v1069
    %v1134 = vcvt.s32.f32 %v1070
    %v1135 = vcvt.s32.f32 %v1071
    %v1136 = vcvt.s32.f32 %v1072
    %v1137 = vcvt.s32.f32 %v1073
    %v1138 = vcvt.s32.f32 %v1074
    %v1139 = vcvt.s32.f32 %v1075
    %v1140 = vcvt.s32.f32 %v1076
    %v1141 = vcvt.s32.f32 %v1077
    %v1142 = vcvt.s32.f32 %v1078
    %v1143 = vcvt.s32.f32 %v1079
    %v1144 = vcvt.s32.f32 %v1080
    %v1145 = vcvt.s32.f32 %v1081
    %v1146 = vcvt.s32.f32 %v1082
    %v1147 = vcvt.s32.f32 %v1083
    %v1148 = vcvt.s32.f32 %v1084
    %v1149 = vcvt.s32.f32 %v1085
    %v1150 = vcvt.s32.f32 %v1086
    %v1151 = vcvt.s32.f32 %v1087
    %v1152 = vcvt.s32.f32 %v1088
    %v1153 = vcvt.s32.f32 %v1089
    %v1154 = vcvt.s32.f32 %v1090
    %v1155 = vcvt.s32.f32 %v1091
    %v1156 = vcvt.s32.f32 %v1092
    %v1157 = vcvt.s32.f32 %v1093
    %v1158 = vcvt.s32.f32 %v1094
    %v1159 = vcvt.s32.f32 %v1095
    %v1160 = vcvt.s32.f32 %v1096
    %v1161 = vcvt.s32.f32 %v1097
    %v1162 = vcvt.s32.f32 %v1098
    %v1163 = vcvt.s32.f32 %v1099
    %v1164 = vcvt.s32.f32 %v1100
    %v1165 = vcvt.s32.f32 %v1101
    %v1166 = vcvt.s32.f32 %v1102
    %v1167 = vcvt.s32.f32 %v1103
    %v1168 = vcvt.s32.f32 %v1104
    %v1169 = vcvt.s32.f32 %v1105
    %v1170 = vcvt.s32.f32 %v1106
    %v1171 = vcvt.s32.f32 %v1107
    %v1172 = vcvt.s32.f32 %v1108
    %1173 = vmatprep.subr.mxu0 %v1110
    %1174 = vmatpush1.msra.mxu0 %v1109
    %1175 = vmatprep.subr.mxu0 %v1114
    %1176 = vmatpush1.msra.mxu0 %v1113
    %1177 = vmatprep.subr.mxu0 %v1118
    %1178 = vmatpush1.msra.mxu0 %v1117
    %1179 = vmatprep.subr.mxu0 %v1122
    %1180 = vmatpush1.msra.mxu0 %v1121
    %1181 = vmatprep.subr.mxu0 %v1126
    %1182 = vmatpush1.msra.mxu0 %v1125
    %1183 = vmatprep.subr.mxu0 %v1130
    %1184 = vmatpush1.msra.mxu0 %v1129
    %1185 = vmatprep.subr.mxu0 %v1134
    %1186 = vmatpush1.msra.mxu0 %v1133
    %1187 = vmatprep.subr.mxu0 %v1138
    %1188 = vmatpush1.msra.mxu0 %v1137
    %1189 = vmatprep.subr.mxu0 %v1142
    %1190 = vmatpush1.msra.mxu0 %v1141
    %1191 = vmatprep.subr.mxu0 %v1146
    %1192 = vmatpush1.msra.mxu0 %v1145
    %1193 = vmatprep.subr.mxu0 %v1150
    %1194 = vmatpush1.msra.mxu0 %v1149
    %1195 = vmatprep.subr.mxu0 %v1154
    %1196 = vmatpush1.msra.mxu0 %v1153
    %1197 = vmatprep.subr.mxu0 %v1158
    %1198 = vmatpush1.msra.mxu0 %v1157
    %1199 = vmatprep.subr.mxu0 %v1162
    %1200 = vmatpush1.msra.mxu0 %v1161
    %1201 = vmatprep.subr.mxu0 %v1166
    %1202 = vmatpush1.msra.mxu0 %v1165
    %1203 = vmatprep.subr.mxu0 %v1170
    %1204 = vmatpush1.msra.mxu0 %v1169
    %1205 = vmatprep.subr.mxu0 0.0
    %1206 = vmatpush1.msra.mxu0 0.0
    %1207 = vmatprep.subr.mxu0 0.0
    %1208 = vmatpush1.msra.mxu0 0.0
    %1209 = vmatprep.subr.mxu0 0.0
    %1210 = vmatpush1.msra.mxu0 0.0
    %1211 = vmatprep.subr.mxu0 0.0
    %1212 = vmatpush1.msra.mxu0 0.0
    %1213 = vmatprep.subr.mxu0 0.0
    %1214 = vmatpush1.msra.mxu0 0.0
    %1215 = vmatprep.subr.mxu0 0.0
    %1216 = vmatpush1.msra.mxu0 0.0
    %1217 = vmatprep.subr.mxu0 0.0
    %1218 = vmatpush1.msra.mxu0 0.0
    %1219 = vmatprep.subr.mxu0 0.0
    %1220 = vmatpush1.msra.mxu0 0.0
    %1221 = vmatprep.subr.mxu0 0.0
    %1222 = vmatpush1.msra.mxu0 0.0
    %1223 = vmatprep.subr.mxu0 0.0
    %1224 = vmatpush1.msra.mxu0 0.0
    %1225 = vmatprep.subr.mxu0 0.0
    %1226 = vmatpush1.msra.mxu0 0.0
    %1227 = vmatprep.subr.mxu0 0.0
    %1228 = vmatpush1.msra.mxu0 0.0
    %1229 = vmatprep.subr.mxu0 0.0
    %1230 = vmatpush1.msra.mxu0 0.0
    %1231 = vmatprep.subr.mxu0 0.0
    %1232 = vmatpush1.msra.mxu0 0.0
    %1233 = vmatprep.subr.mxu0 0.0
    %1234 = vmatpush1.msra.mxu0 0.0
    %1235 = vmatprep.subr.mxu0 0.0
    %1236 = vmatpush1.msra.mxu0 0.0
    %1237 = vmatprep.mubr.f32.mxu0 0.0
    %1238 = vmatmul.mubr.f32.gmra.mrb[0].mxu0 %v39
    %v1239 = vpop.f32.mrb[0].mxu0
    %v1240 = vadd.f32 0.0, %v1239
    %v1241 = vpop.f32.mrb[0].mxu0
    %v1242 = vadd.f32 0.0, %v1241
    %1243 = vdwg.mxu0
    %1244 = vmatprep.subr.mxu0 %v1112
    %1245 = vmatpush1.msra.mxu0 %v1111
    %1246 = vmatprep.subr.mxu0 %v1116
    %1247 = vmatpush1.msra.mxu0 %v1115
    %1248 = vmatprep.subr.mxu0 %v1120
    %1249 = vmatpush1.msra.mxu0 %v1119
    %1250 = vmatprep.subr.mxu0 %v1124
    %1251 = vmatpush1.msra.mxu0 %v1123
    %1252 = vmatprep.subr.mxu0 %v1128
    %1253 = vmatpush1.msra.mxu0 %v1127
    %1254 = vmatprep.subr.mxu0 %v1132
    %1255 = vmatpush1.msra.mxu0 %v1131
    %1256 = vmatprep.subr.mxu0 %v1136
    %1257 = vmatpush1.msra.mxu0 %v1135
    %1258 = vmatprep.subr.mxu0 %v1140
    %1259 = vmatpush1.msra.mxu0 %v1139
    %1260 = vmatprep.subr.mxu0 %v1144
    %1261 = vmatpush1.msra.mxu0 %v1143
    %1262 = vmatprep.subr.mxu0 %v1148
    %1263 = vmatpush1.msra.mxu0 %v1147
    %1264 = vmatprep.subr.mxu0 %v1152
    %1265 = vmatpush1.msra.mxu0 %v1151
    %1266 = vmatprep.subr.mxu0 %v1156
    %1267 = vmatpush1.msra.mxu0 %v1155
    %1268 = vmatprep.subr.mxu0 %v1160
    %1269 = vmatpush1.msra.mxu0 %v1159
    %1270 = vmatprep.subr.mxu0 %v1164
    %1271 = vmatpush1.msra.mxu0 %v1163
    %1272 = vmatprep.subr.mxu0 %v1168
    %1273 = vmatpush1.msra.mxu0 %v1167
    %1274 = vmatprep.subr.mxu0 %v1172
    %1275 = vmatpush1.msra.mxu0 %v1171
    %1276 = vmatprep.subr.mxu0 0.0
    %1277 = vmatpush1.msra.mxu0 0.0
    %1278 = vmatprep.subr.mxu0 0.0
    %1279 = vmatpush1.msra.mxu0 0.0
    %1280 = vmatprep.subr.mxu0 0.0
    %1281 = vmatpush1.msra.mxu0 0.0
    %1282 = vmatprep.subr.mxu0 0.0
    %1283 = vmatpush1.msra.mxu0 0.0
    %1284 = vmatprep.subr.mxu0 0.0
    %1285 = vmatpush1.msra.mxu0 0.0
    %1286 = vmatprep.subr.mxu0 0.0
    %1287 = vmatpush1.msra.mxu0 0.0
    %1288 = vmatprep.subr.mxu0 0.0
    %1289 = vmatpush1.msra.mxu0 0.0
    %1290 = vmatprep.subr.mxu0 0.0
    %1291 = vmatpush1.msra.mxu0 0.0
    %1292 = vmatprep.subr.mxu0 0.0
    %1293 = vmatpush1.msra.mxu0 0.0
    %1294 = vmatprep.subr.mxu0 0.0
    %1295 = vmatpush1.msra.mxu0 0.0
    %1296 = vmatprep.subr.mxu0 0.0
    %1297 = vmatpush1.msra.mxu0 0.0
    %1298 = vmatprep.subr.mxu0 0.0
    %1299 = vmatpush1.msra.mxu0 0.0
    %1300 = vmatprep.subr.mxu0 0.0
    %1301 = vmatpush1.msra.mxu0 0.0
    %1302 = vmatprep.subr.mxu0 0.0
    %1303 = vmatpush1.msra.mxu0 0.0
    %1304 = vmatprep.subr.mxu0 0.0
    %1305 = vmatpush1.msra.mxu0 0.0
    %1306 = vmatprep.subr.mxu0 0.0
    %1307 = vmatpush1.msra.mxu0 0.0
    %1308 = vmatprep.mubr.f32.mxu0 0.0
    %1309 = vmatmul.mubr.f32.gmra.mrb[0].mxu0 %v39
    %v1310 = vpop.f32.mrb[0].mxu0
    %v1311 = vadd.f32 0.0, %v1310
    %v1312 = vpop.f32.mrb[0].mxu0
    %v1313 = vadd.f32 0.0, %v1312
    %1314 = vdwg.mxu0
    %v1319 = vcombine.low %v1240, %v1242
    %v1320 = vcombine.low %v1311, %v1313
    %1323 = vst [vmem:[#allocation2] sm:$0xff] %v1319
    %1324 = vst [vmem:[#allocation2 + $0x8] sm:$0xff] %v1320
    %v1325 = vcombine.low %v977, %v978
    %v1326 = vcombine.low %v979, %v980
    %v1328 = vunpack.c.l.s4 1966171168
    %v1329 = vunpack.c.0.s8 %v1328
    %v1330 = vlaneseq
    %v1331 = vshrl.u32 %v1330, 7
    %v1332 = vsub.s32 %v1329, %v1331
    %v1333 = vrot.slane %v1325, %v1332
    %v1335 = vunpack.c.l.s4 1966171168
    %v1336 = vunpack.c.0.s8 %v1335
    %v1337 = vlaneseq
    %v1338 = vshrl.u32 %v1337, 7
    %v1339 = vsub.s32 %v1336, %v1338
    %v1340 = vrot.slane %v1326, %v1339
    %v1341 = vcombine.low %v1333, %v1340
    %v1343 = vunpack.c.l.s4 1966171168
    %v1344 = vunpack.c.0.s8 %v1343
    %v1345 = vlaneseq
    %v1346 = vshrl.u32 %v1345, 7
    %v1347 = vsub.s32 %v1344, %v1346
    %v1348 = vrot.slane %v1341, %v1347
    %v1349 = vlaneseq
    %vm1350 = vcmp.ge.s32.totalorder %v1349, 0
    %vm1351 = vcmp.lt.s32.totalorder %v1349, 512
    %vm1352 = vmand %vm1350, %vm1351
    %1353 = vst.msk [vmem:[#allocation4] sm:$0xf] %vm1352, %v1348
    // Predicated region
    $region18: #{tpu_custom_call.1} parent=1 // pred_check
      _
    $region19: #{tpu_custom_call.1} parent=1 // pred_check_branch
      %1355 = sbr.rel (0) target = $region21
    $region20: #{tpu_custom_call.1} parent=1 // pred_region
      %s1357 = ssub.s32 256, 256
      %1358 = vsyncadd [#allocation3], %s1357
      %s1360 = sshll.u32 [#allocation2], 4
      %s1361 = int_to_ptr.vmem [resolvable:$true] %s1360
      %1363 = dma.vmem_to_hbm [thread:$0]  %s1361, 256, %s4, [#allocation3]
    $region21: #{tpu_custom_call.1} parent=1 // pred_fallthru
      _
    // Predicated region
    $region22: #{tpu_custom_call.1} parent=1 // pred_check
      _
    $region23: #{tpu_custom_call.1} parent=1 // pred_check_branch
      %1365 = sbr.rel (0) target = $region25
    $region24: #{tpu_custom_call.1} parent=1 // pred_region
      %s1367 = ssub.s32 64, 64
      %1368 = vsyncadd [#allocation5], %s1367
      %s1370 = sshll.u32 [#allocation4], 4
      %s1371 = int_to_ptr.vmem [resolvable:$true] %s1370
      %1373 = dma.vmem_to_hbm [thread:$0]  %s1371, 64, %s5, [#allocation5]
    $region25: #{tpu_custom_call.1} parent=1 // pred_fallthru
      _
    // Predicated region
    $region26: #{tpu_custom_call.1} parent=1 // pred_check
      _
    $region27: #{tpu_custom_call.1} parent=1 // pred_check_branch
      %1375 = sbr.rel (0) target = $region29
    $region28: #{tpu_custom_call.1} parent=1 // pred_region
      %1376 = dma.done [#allocation3], 256
    $region29: #{tpu_custom_call.1} parent=1 // pred_fallthru
      _
    // Predicated region
    $region30: #{tpu_custom_call.1} parent=1 // pred_check
      _
    $region31: #{tpu_custom_call.1} parent=1 // pred_check_branch
      %1378 = sbr.rel (0) target = $region33
    $region32: #{tpu_custom_call.1} parent=1 // pred_region
      %1379 = dma.done [#allocation5], 64
    $region33: #{tpu_custom_call.1} parent=1 // pred_fallthru
      _
    %1380 = vsyncpa [#allocation3], 1
    %1381 = vsyncpa [#allocation5], 1

</llo_original>
